<compile_context>
chip_gen: v7x
topology: tpu7x:2x2x1
jax: 0.10.0
libtpu: 0.0.40
codegen_flags: <defaults>
</compile_context>

<pallas_src>
import functools

import jax
import jax.numpy as jnp
from jax.experimental import pallas as pl
from jax.experimental.pallas import tpu as pltpu

GAMMA = 2.0
ALPHA = 0.25  # unused in forward (matches PyTorch reference)


def _focal_loss_kernel(x_ref, t_ref, o_ref, *, num_classes, gamma):
    # x_ref: (1, C, S_TILE, 128) logits block
    # t_ref: (1, S_TILE, 128)    int32 labels block
    # o_ref: (1, S_TILE, 128)    f32 partial-sum block (resident across axis 1)
    j = pl.program_id(1)

    @pl.when(j == 0)
    def _():
        o_ref[...] = jnp.zeros_like(o_ref)

    t = t_ref[0]                                        # (S_TILE, 128) int32

    # Running max over classes (unrolled; lane+sublane dense VPU ops).
    m = x_ref[0, 0].astype(jnp.float32)
    for c in range(1, num_classes):
        m = jnp.maximum(m, x_ref[0, c].astype(jnp.float32))

    # Sum of exp and target-logit select in one unrolled pass over classes.
    s = jnp.zeros_like(m)
    x_t = jnp.zeros_like(m)
    for c in range(num_classes):
        xc = x_ref[0, c].astype(jnp.float32)
        s = s + jnp.exp(xc - m)
        x_t = x_t + jnp.where(t == c, xc, 0.0)

    # Per-pixel cross entropy: logp = logsumexp(x) - x[target]
    logp = m + jnp.log(s) - x_t                         # (S_TILE, 128)
    p = jnp.exp(-logp)
    one_m_p = jnp.maximum(1.0 - p, 0.0)                 # clamp: no NaN if p ~ 1+eps

    # Focal modulation (1 - p)^gamma — integer-exponent fast path (VPU muls).
    if float(gamma) == float(int(gamma)) and int(gamma) >= 0:
        g = int(gamma)
        if g == 0:
            mod = jnp.ones_like(one_m_p)
        else:
            mod = one_m_p
            for _ in range(g - 1):
                mod = mod * one_m_p
    else:
        mod = jnp.power(one_m_p, gamma)

    # Lane/sublane-wide partial-sum accumulation (no in-kernel reduction).
    o_ref[0] = o_ref[0] + mod * logp


def focal_loss_pallas(logits_nchw, target_nhw, gamma=GAMMA, tile_pixels=4096):
    """logits_nchw: (N, C, H, W) float; target_nhw: (N, H, W) int -> scalar mean loss."""
    n, c, h, w = logits_nchw.shape
    hw = h * w
    assert hw % 128 == 0, "H*W must be a multiple of 128"
    s = hw // 128  # pixel rows of 128 lanes

    # Pick the sublane-tile: largest divisor of s that is <= tile_pixels/128
    # and either a multiple of 8 or the full extent (keeps blocks (8,128)-legal).
    cap = max(1, tile_pixels // 128)
    s_tile = s
    for d in range(min(s, cap), 0, -1):
        if s % d == 0 and (d % 8 == 0 or d == s):
            s_tile = d
            break

    # Contiguous reshapes only — no transpose, no extra HBM round trip.
    x = logits_nchw.reshape(n, c, s, 128)
    t = target_nhw.reshape(n, s, 128).astype(jnp.int32)

    grid = (n, s // s_tile)
    kernel = functools.partial(_focal_loss_kernel, num_classes=c, gamma=gamma)

    partial_sums = pl.pallas_call(
        kernel,
        out_shape=jax.ShapeDtypeStruct((n, s_tile, 128), jnp.float32),
        grid_spec=pltpu.PrefetchScalarGridSpec(
            num_scalar_prefetch=0,
            grid=grid,
            in_specs=[
                pl.BlockSpec((1, c, s_tile, 128), lambda ni, ji: (ni, 0, ji, 0)),
                pl.BlockSpec((1, s_tile, 128), lambda ni, ji: (ni, ji, 0)),
            ],
            out_specs=pl.BlockSpec((1, s_tile, 128), lambda ni, ji: (ni, 0, 0)),
        ),
        compiler_params=pltpu.CompilerParams(
            dimension_semantics=("parallel", "arbitrary")),
    )(x, t)

    # Final tiny reduction + mean in the wrapper.
    return jnp.sum(partial_sums) / (n * hw)


def focal_loss_ref(logits_nchw, target_nhw, gamma=GAMMA):
    n, c, h, w = logits_nchw.shape
    x = jnp.transpose(logits_nchw, (0, 2, 3, 1)).reshape(-1, c).astype(jnp.float32)
    t = target_nhw.reshape(-1).astype(jnp.int32)
    logp = -jnp.take_along_axis(jax.nn.log_softmax(x, axis=-1), t[:, None], axis=-1)[:, 0]
    p = jnp.exp(-logp)
    return jnp.mean((1.0 - p) ** gamma * logp)


if __name__ == "__main__":
    key = jax.random.PRNGKey(0)
    k1, k2 = jax.random.split(key)
    N, C, H, W = 2, 4, 16, 16
    logits = jax.random.normal(k1, (N, C, H, W), dtype=jnp.float32)
    target = jax.random.randint(k2, (N, H, W), 0, C, dtype=jnp.int32)

    loss = focal_loss_pallas(logits, target)
    jax.block_until_ready(loss)

    ref = focal_loss_ref(logits, target)
    assert jnp.allclose(loss, ref, rtol=1e-5, atol=1e-6), (loss, ref)
    print("KERNEL_OK")
</pallas_src>

<mosaic_0001>
module attributes {stable_mosaic.version = 11 : i64} {
  func.func @_focal_loss_kernel(%arg0: i32, %arg1: i32, %arg2: memref<1x4x2x128xf32, #tpu.memory_space<vmem>>, %arg3: memref<1x2x128xi32, #tpu.memory_space<vmem>>, %arg4: memref<1x2x128xf32, #tpu.memory_space<vmem>>) attributes {dimension_semantics = [#tpu.dimension_semantics<parallel>, #tpu.dimension_semantics<arbitrary>], iteration_bounds = array<i64: 2, 1>, scalar_prefetch = 0 : i64, scratch_operands = 0 : i64, tpu.core_type = #tpu.core_type<tc>, window_params = [{transform_indices = @transform_0, window_bounds = array<i64: 1, 4, 2, 128>}, {transform_indices = @transform_1, window_bounds = array<i64: 1, 2, 128>}, {transform_indices = @transform_2, window_bounds = array<i64: 1, 2, 128>}]} {
    %c0_i32 = arith.constant 0 : i32
    %0 = arith.cmpi eq, %arg1, %c0_i32 : i32
    %1 = arith.extui %0 : i1 to i32
    %c0_i32_0 = arith.constant 0 : i32
    %2 = arith.cmpi ne, %1, %c0_i32_0 : i32
    scf.if %2 {
      %cst_47 = arith.constant 0.000000e+00 : f32
      %76 = vector.broadcast %cst_47 : f32 to vector<1x2x128xf32>
      %c0_48 = arith.constant 0 : index
      %c0_49 = arith.constant 0 : index
      %c0_50 = arith.constant 0 : index
      %77 = vector.load %arg4[%c0_48, %c0_49, %c0_50] : memref<1x2x128xf32, #tpu.memory_space<vmem>>, vector<1x2x128xf32>
      tpu.vector_store %arg4[%c0_48, %c0_49, %c0_50], %76 {strides = array<i32>} : memref<1x2x128xf32, #tpu.memory_space<vmem>>, vector<1x2x128xf32>,
    } else {
    }
    %c0 = arith.constant 0 : index
    %c0_1 = arith.constant 0 : index
    %c0_2 = arith.constant 0 : index
    %3 = vector.load %arg3[%c0, %c0_1, %c0_2] : memref<1x2x128xi32, #tpu.memory_space<vmem>>, vector<1x2x128xi32>
    %4 = vector.shape_cast %3 : vector<1x2x128xi32> to vector<2x128xi32>
    %c0_3 = arith.constant 0 : index
    %c0_4 = arith.constant 0 : index
    %c0_5 = arith.constant 0 : index
    %c0_6 = arith.constant 0 : index
    %5 = vector.load %arg2[%c0_3, %c0_4, %c0_5, %c0_6] : memref<1x4x2x128xf32, #tpu.memory_space<vmem>>, vector<1x1x2x128xf32>
    %6 = vector.shape_cast %5 : vector<1x1x2x128xf32> to vector<2x128xf32>
    %c0_7 = arith.constant 0 : index
    %c1 = arith.constant 1 : index
    %c0_8 = arith.constant 0 : index
    %c0_9 = arith.constant 0 : index
    %7 = vector.load %arg2[%c0_7, %c1, %c0_8, %c0_9] : memref<1x4x2x128xf32, #tpu.memory_space<vmem>>, vector<1x1x2x128xf32>
    %8 = vector.shape_cast %7 : vector<1x1x2x128xf32> to vector<2x128xf32>
    %9 = arith.maximumf %6, %8 : vector<2x128xf32>
    %c0_10 = arith.constant 0 : index
    %c2 = arith.constant 2 : index
    %c0_11 = arith.constant 0 : index
    %c0_12 = arith.constant 0 : index
    %10 = vector.load %arg2[%c0_10, %c2, %c0_11, %c0_12] : memref<1x4x2x128xf32, #tpu.memory_space<vmem>>, vector<1x1x2x128xf32>
    %11 = vector.shape_cast %10 : vector<1x1x2x128xf32> to vector<2x128xf32>
    %12 = arith.maximumf %9, %11 : vector<2x128xf32>
    %c0_13 = arith.constant 0 : index
    %c3 = arith.constant 3 : index
    %c0_14 = arith.constant 0 : index
    %c0_15 = arith.constant 0 : index
    %13 = vector.load %arg2[%c0_13, %c3, %c0_14, %c0_15] : memref<1x4x2x128xf32, #tpu.memory_space<vmem>>, vector<1x1x2x128xf32>
    %14 = vector.shape_cast %13 : vector<1x1x2x128xf32> to vector<2x128xf32>
    %15 = arith.maximumf %12, %14 : vector<2x128xf32>
    %cst = arith.constant 0.000000e+00 : f32
    %16 = vector.broadcast %cst : f32 to vector<2x128xf32>
    %cst_16 = arith.constant 0.000000e+00 : f32
    %17 = vector.broadcast %cst_16 : f32 to vector<2x128xf32>
    %c0_17 = arith.constant 0 : index
    %c0_18 = arith.constant 0 : index
    %c0_19 = arith.constant 0 : index
    %c0_20 = arith.constant 0 : index
    %18 = vector.load %arg2[%c0_17, %c0_18, %c0_19, %c0_20] : memref<1x4x2x128xf32, #tpu.memory_space<vmem>>, vector<1x1x2x128xf32>
    %19 = vector.shape_cast %18 : vector<1x1x2x128xf32> to vector<2x128xf32>
    %20 = arith.subf %19, %15 : vector<2x128xf32>
    %21 = math.exp %20 : vector<2x128xf32>
    %22 = arith.addf %16, %21 : vector<2x128xf32>
    %c0_i32_21 = arith.constant 0 : i32
    %23 = vector.broadcast %c0_i32_21 : i32 to vector<2x128xi32>
    %24 = arith.cmpi eq, %4, %23 : vector<2x128xi32>
    %cst_22 = arith.constant 0.000000e+00 : f32
    %25 = vector.broadcast %cst_22 : f32 to vector<2x128xf32>
    %26 = arith.select %24, %19, %25 : vector<2x128xi1>, vector<2x128xf32>
    %27 = arith.addf %17, %26 : vector<2x128xf32>
    %c0_23 = arith.constant 0 : index
    %c1_24 = arith.constant 1 : index
    %c0_25 = arith.constant 0 : index
    %c0_26 = arith.constant 0 : index
    %28 = vector.load %arg2[%c0_23, %c1_24, %c0_25, %c0_26] : memref<1x4x2x128xf32, #tpu.memory_space<vmem>>, vector<1x1x2x128xf32>
    %29 = vector.shape_cast %28 : vector<1x1x2x128xf32> to vector<2x128xf32>
    %30 = arith.subf %29, %15 : vector<2x128xf32>
    %31 = math.exp %30 : vector<2x128xf32>
    %32 = arith.addf %22, %31 : vector<2x128xf32>
    %c1_i32 = arith.constant 1 : i32
    %33 = vector.broadcast %c1_i32 : i32 to vector<2x128xi32>
    %34 = arith.cmpi eq, %4, %33 : vector<2x128xi32>
    %cst_27 = arith.constant 0.000000e+00 : f32
    %35 = vector.broadcast %cst_27 : f32 to vector<2x128xf32>
    %36 = arith.select %34, %29, %35 : vector<2x128xi1>, vector<2x128xf32>
    %37 = arith.addf %27, %36 : vector<2x128xf32>
    %c0_28 = arith.constant 0 : index
    %c2_29 = arith.constant 2 : index
    %c0_30 = arith.constant 0 : index
    %c0_31 = arith.constant 0 : index
    %38 = vector.load %arg2[%c0_28, %c2_29, %c0_30, %c0_31] : memref<1x4x2x128xf32, #tpu.memory_space<vmem>>, vector<1x1x2x128xf32>
    %39 = vector.shape_cast %38 : vector<1x1x2x128xf32> to vector<2x128xf32>
    %40 = arith.subf %39, %15 : vector<2x128xf32>
    %41 = math.exp %40 : vector<2x128xf32>
    %42 = arith.addf %32, %41 : vector<2x128xf32>
    %c2_i32 = arith.constant 2 : i32
    %43 = vector.broadcast %c2_i32 : i32 to vector<2x128xi32>
    %44 = arith.cmpi eq, %4, %43 : vector<2x128xi32>
    %cst_32 = arith.constant 0.000000e+00 : f32
    %45 = vector.broadcast %cst_32 : f32 to vector<2x128xf32>
    %46 = arith.select %44, %39, %45 : vector<2x128xi1>, vector<2x128xf32>
    %47 = arith.addf %37, %46 : vector<2x128xf32>
    %c0_33 = arith.constant 0 : index
    %c3_34 = arith.constant 3 : index
    %c0_35 = arith.constant 0 : index
    %c0_36 = arith.constant 0 : index
    %48 = vector.load %arg2[%c0_33, %c3_34, %c0_35, %c0_36] : memref<1x4x2x128xf32, #tpu.memory_space<vmem>>, vector<1x1x2x128xf32>
    %49 = vector.shape_cast %48 : vector<1x1x2x128xf32> to vector<2x128xf32>
    %50 = arith.subf %49, %15 : vector<2x128xf32>
    %51 = math.exp %50 : vector<2x128xf32>
    %52 = arith.addf %42, %51 : vector<2x128xf32>
    %c3_i32 = arith.constant 3 : i32
    %53 = vector.broadcast %c3_i32 : i32 to vector<2x128xi32>
    %54 = arith.cmpi eq, %4, %53 : vector<2x128xi32>
    %cst_37 = arith.constant 0.000000e+00 : f32
    %55 = vector.broadcast %cst_37 : f32 to vector<2x128xf32>
    %56 = arith.select %54, %49, %55 : vector<2x128xi1>, vector<2x128xf32>
    %57 = arith.addf %47, %56 : vector<2x128xf32>
    %58 = math.log %52 : vector<2x128xf32>
    %59 = arith.addf %15, %58 : vector<2x128xf32>
    %60 = arith.subf %59, %57 : vector<2x128xf32>
    %cst_38 = arith.constant 0.000000e+00 : f32
    %61 = vector.broadcast %cst_38 : f32 to vector<2x128xf32>
    %62 = arith.subf %61, %60 : vector<2x128xf32>
    %63 = math.exp %62 : vector<2x128xf32>
    %cst_39 = arith.constant 1.000000e+00 : f32
    %64 = vector.broadcast %cst_39 : f32 to vector<2x128xf32>
    %65 = arith.subf %64, %63 : vector<2x128xf32>
    %cst_40 = arith.constant 0.000000e+00 : f32
    %66 = vector.broadcast %cst_40 : f32 to vector<2x128xf32>
    %67 = arith.maximumf %65, %66 : vector<2x128xf32>
    %68 = arith.mulf %67, %67 : vector<2x128xf32>
    %c0_41 = arith.constant 0 : index
    %c0_42 = arith.constant 0 : index
    %c0_43 = arith.constant 0 : index
    %69 = vector.load %arg4[%c0_41, %c0_42, %c0_43] : memref<1x2x128xf32, #tpu.memory_space<vmem>>, vector<1x2x128xf32>
    %70 = vector.shape_cast %69 : vector<1x2x128xf32> to vector<2x128xf32>
    %71 = arith.mulf %68, %60 : vector<2x128xf32>
    %72 = arith.addf %70, %71 : vector<2x128xf32>
    %c0_44 = arith.constant 0 : index
    %c0_45 = arith.constant 0 : index
    %c0_46 = arith.constant 0 : index
    %73 = vector.load %arg4[%c0_44, %c0_45, %c0_46] : memref<1x2x128xf32, #tpu.memory_space<vmem>>, vector<1x2x128xf32>
    %74 = vector.shape_cast %73 : vector<1x2x128xf32> to vector<2x128xf32>
    %75 = vector.shape_cast %72 : vector<2x128xf32> to vector<1x2x128xf32>
    tpu.vector_store %arg4[%c0_44, %c0_45, %c0_46], %75 {strides = array<i32>} : memref<1x2x128xf32, #tpu.memory_space<vmem>>, vector<1x2x128xf32>,
    return
  }
  func.func @transform_0(%arg0: i32, %arg1: i32) -> (i32, i32, i32, i32) {
    %c0_i32 = arith.constant 0 : i32
    %c0_i32_0 = arith.constant 0 : i32
    %c0_i32_1 = arith.constant 0 : i32
    return %arg0, %c0_i32, %arg1, %c0_i32_0 : i32, i32, i32, i32
  }
  func.func @transform_1(%arg0: i32, %arg1: i32) -> (i32, i32, i32) {
    %c0_i32 = arith.constant 0 : i32
    %c0_i32_0 = arith.constant 0 : i32
    return %arg0, %arg1, %c0_i32 : i32, i32, i32
  }
  func.func @transform_2(%arg0: i32, %arg1: i32) -> (i32, i32, i32) {
    %c0_i32 = arith.constant 0 : i32
    %c0_i32_0 = arith.constant 0 : i32
    %c0_i32_1 = arith.constant 0 : i32
    return %arg0, %c0_i32, %c0_i32_0 : i32, i32, i32
  }
}

</mosaic_0001>

<llo_original>
// kernel: tpu_custom_call.1
$region0: #{tpu_custom_call.1}
  #allocation0 [shape = 'u32[]', space=smem, size = 0x4, offset = 0x4, fixed_abs, tag = 'smem constant byte address 0x4 - core index']
  #allocation1 [shape = 'u32[144,128]{1,0:T(1,128)}', space=vmem, size = 0x12000, scoped, tag = 'internal scratch']
  %s0 = inlined_call_operand.hbm [shape: f32[2,4,2,128], index: 0, kind: input, shape index: {}]
  %s1 = inlined_call_operand.hbm [shape: s32[2,2,128], index: 1, kind: input, shape index: {}]
  %s2 = inlined_call_operand.hbm [shape: f32[2,2,128], index: 2, kind: output, shape index: {}]
  %s3 = sld [smem:[#allocation0]]
  $region53: #{tpu_custom_call.1} parent=0
    _
  %s5 = ssub.s32 1, %s3
  %s6 = scalar_select 0, %s5, %s3
  $region1: #{tpu_custom_call.1} parent=0
    #allocation2 [shape = 'u8[8192]{0}', space=vmem, size = 0x2000, scoped, tag = 'input window, operand 0']
    #allocation3 [shape = 's32[2]{0}', space=sflag, size = 0x8, scoped, tag = 'scoped memory for tpu_custom_call.1']
    #allocation4 [shape = 's32[2]{0}', space=sflag, size = 0x8, scoped, tag = 'scoped memory for tpu_custom_call.1']
    #allocation5 [shape = 'u8[2048]{0}', space=vmem, size = 0x800, scoped, tag = 'input window, operand 1']
    #allocation6 [shape = 's32[2]{0}', space=sflag, size = 0x8, scoped, tag = 'scoped memory for tpu_custom_call.1']
    #allocation7 [shape = 'u8[2048]{0}', space=vmem, size = 0x800, scoped, tag = 'output window, operand 0']
    %7 = vsyncpa [#allocation3], 0
    %s8 = scalar_lea.sflag [#allocation3], 1
    %9 = vsyncpa %s8, 0
    %10 = vsyncpa [#allocation6], 0
    %s11 = scalar_lea.sflag [#allocation6], 1
    %12 = vsyncpa %s11, 0
    %13 = vsyncpa [#allocation4], 0
    %s14 = scalar_lea.sflag [#allocation4], 1
    %15 = vsyncpa %s14, 0
    loop: start=0, step=1, limit=4
    $region2: #{tpu_custom_call.1} parent=1 // loop_pre_header
      _
    $region3: #{tpu_custom_call.1} parent=1 // loop_header
      %s17 = sphi 0, %s21
      %p18 = scmp.ge.s32.totalorder %s17, 4
      %s24 = sphi 0, %s36
      %s25 = sphi 0, %s32
      %s26 = sphi 0, %s24
      %s27 = sphi 0, %s25
      %s28 = sphi 0, %s26
      %s29 = sphi 0, %s27
      %s41 = sphi 0, %s43
      %s44 = sphi 0, %s41
      %s45 = sphi 0, %s44
      %s61 = sphi 0, %s45
      %s69 = sphi 0, %s71
      %s72 = sphi 0, %s69
      %s73 = sphi 0, %s72
      %s89 = sphi 0, %s73
      %s95 = sphi 0, %s97
      %s98 = sphi 0, %s95
      %s99 = sphi 0, %s98
      %s115 = sphi 0, %s99
    $region4: #{tpu_custom_call.1} parent=1 // loop_header_branch
      %20 = sbr.rel (%p18) target = $region8
    $region5: #{tpu_custom_call.1} parent=1 // loop_body
      %s22 = ssub.s32 %s17, 1
      %s23 = ssub.s32 %s17, 2
      %s30 = sadd.s32 1, %s25
      %p31 = scmp.ge.s32.totalorder %s30, 1
      %s32 = scalar_select %p31, 0, %s30
      %s33 = sadd.s32 1, %s24
      %s34 = scalar_select %p31, %s33, %s24
      %p35 = scmp.ge.s32.totalorder %s34, 2
      %s36 = scalar_select %p35, 0, %s34
      %s37 = ssub.s32 %s24, %s36
      %s38 = ssub.s32 %s25, %s32
      %s39 = sor.u32 %s37, %s38
      %p40 = scmp.eq.s32.totalorder %s39, 0
      %s42 = sadd.s32 %s41, 1
      %s43 = scalar_select %p40, %s41, %s42
      %p46 = pneg %p40
      %p47 = scmp.eq.s32.totalorder %s17, 1
      %p48 = por %p46, %p47
      %p49 = scmp.ne.s32.totalorder %s41, %s44
      %p50 = scmp.eq.s32.totalorder %s17, 0
      %p51 = por %p49, %p50
      %p52 = scmp.ne.s32.totalorder %s41, %s44
      %p53 = scmp.eq.s32.totalorder %s22, 1
      %p54 = por %p52, %p53
      %p55 = scmp.ne.s32.totalorder %s44, %s45
      %p56 = scmp.eq.s32.totalorder %s22, 0
      %p57 = por %p55, %p56
      %p58 = scmp.ne.s32.totalorder %s44, %s45
      %p59 = scmp.eq.s32.totalorder %s23, 1
      %p60 = por %p58, %p59
      %p62 = scmp.ne.s32.totalorder %s45, %s61
      %p63 = scmp.eq.s32.totalorder %s23, 0
      %p64 = por %p62, %p63
      %s65 = ssub.s32 %s24, %s36
      %s66 = ssub.s32 %s25, %s32
      %s67 = sor.u32 %s65, %s66
      %p68 = scmp.eq.s32.totalorder %s67, 0
      %s70 = sadd.s32 %s69, 1
      %s71 = scalar_select %p68, %s69, %s70
      %p74 = pneg %p68
      %p75 = scmp.eq.s32.totalorder %s17, 1
      %p76 = por %p74, %p75
      %p77 = scmp.ne.s32.totalorder %s69, %s72
      %p78 = scmp.eq.s32.totalorder %s17, 0
      %p79 = por %p77, %p78
      %p80 = scmp.ne.s32.totalorder %s69, %s72
      %p81 = scmp.eq.s32.totalorder %s22, 1
      %p82 = por %p80, %p81
      %p83 = scmp.ne.s32.totalorder %s72, %s73
      %p84 = scmp.eq.s32.totalorder %s22, 0
      %p85 = por %p83, %p84
      %p86 = scmp.ne.s32.totalorder %s72, %s73
      %p87 = scmp.eq.s32.totalorder %s23, 1
      %p88 = por %p86, %p87
      %p90 = scmp.ne.s32.totalorder %s73, %s89
      %p91 = scmp.eq.s32.totalorder %s23, 0
      %p92 = por %p90, %p91
      %s93 = ssub.s32 %s24, %s36
      %p94 = scmp.eq.s32.totalorder %s93, 0
      %s96 = sadd.s32 %s95, 1
      %s97 = scalar_select %p94, %s95, %s96
      %p100 = pneg %p94
      %p101 = scmp.eq.s32.totalorder %s17, 1
      %p102 = por %p100, %p101
      %p103 = scmp.ne.s32.totalorder %s95, %s98
      %p104 = scmp.eq.s32.totalorder %s17, 0
      %p105 = por %p103, %p104
      %p106 = scmp.ne.s32.totalorder %s95, %s98
      %p107 = scmp.eq.s32.totalorder %s22, 1
      %p108 = por %p106, %p107
      %p109 = scmp.ne.s32.totalorder %s98, %s99
      %p110 = scmp.eq.s32.totalorder %s22, 0
      %p111 = por %p109, %p110
      %p112 = scmp.ne.s32.totalorder %s98, %s99
      %p113 = scmp.eq.s32.totalorder %s23, 1
      %p114 = por %p112, %p113
      %p116 = scmp.ne.s32.totalorder %s99, %s115
      %p117 = scmp.eq.s32.totalorder %s23, 0
      %p118 = por %p116, %p117
      %p119 = scmp.le.s32.totalorder 1, %s17
      %p120 = scmp.lt.s32.totalorder %s17, 3
      %p121 = pnand %p119, %p120
      %p122 = pneg %p121
      // Predicated region
      $region9: #{tpu_custom_call.1} parent=5 // pred_check
        _
      $region10: #{tpu_custom_call.1} parent=5 // pred_check_branch
        %124 = sbr.rel (%p121) target = $region12
      $region11: #{tpu_custom_call.1} parent=5 // pred_region
        %s125 = ssub.s32 %s17, 1
      $region12: #{tpu_custom_call.1} parent=5 // pred_fallthru
        _
      %p126 = scmp.lt.s32.totalorder %s17, 2
      // Predicated region
      $region13: #{tpu_custom_call.1} parent=5 // pred_check
        %p127 = pneg %p126
      $region14: #{tpu_custom_call.1} parent=5 // pred_check_branch
        %129 = sbr.rel (%p127) target = $region16
      $region15: #{tpu_custom_call.1} parent=5 // pred_region
        // Predicated region
        $region17: #{tpu_custom_call.1} parent=15 // pred_check
          %p130 = pneg %p51
        $region18: #{tpu_custom_call.1} parent=15 // pred_check_branch
          %132 = sbr.rel (%p130) target = $region20
        $region19: #{tpu_custom_call.1} parent=15 // pred_region
          %s133 = sand.u32 %s41, 1
          %s134 = scalar_lea.sflag [#allocation3], %s133
          %s135 = sand.u32 %s41, 1
          %s136 = smul.addr %s135, 8
          %s137 = scalar_lea.vmem [#allocation2], %s136
          %s139 = ssub.s32 128, 128
          %140 = vsyncadd %s134, %s139
          %s141 = smul.addr %s24, 4
          %s142 = sadd.s32 %s25, %s141
          %s143 = smul.addr %s142, 32
          %s144 = scalar_lea.hbm %s0, %s143
          %s145 = sshll.u32 %s137, 4
          %s146 = int_to_ptr.vmem [resolvable:$true] %s145
          %151 = dma.hbm_to_vmem [thread:$0]  %s144, 128, %s146, %s134, 32, 32, 2
        $region20: #{tpu_custom_call.1} parent=15 // pred_fallthru
          _
        // Predicated region
        $region21: #{tpu_custom_call.1} parent=15 // pred_check
          %p152 = pneg %p79
        $region22: #{tpu_custom_call.1} parent=15 // pred_check_branch
          %154 = sbr.rel (%p152) target = $region24
        $region23: #{tpu_custom_call.1} parent=15 // pred_region
          %s155 = sand.u32 %s69, 1
          %s156 = scalar_lea.sflag [#allocation6], %s155
          %s157 = sand.u32 %s69, 1
          %s158 = smul.addr %s157, 2
          %s159 = scalar_lea.vmem [#allocation5], %s158
          %s161 = ssub.s32 32, 32
          %162 = vsyncadd %s156, %s161
          %s163 = sadd.s32 %s25, %s24
          %s164 = smul.addr %s163, 32
          %s165 = scalar_lea.hbm %s1, %s164
          %s167 = sshll.u32 %s159, 4
          %s168 = int_to_ptr.vmem [resolvable:$true] %s167
          %170 = dma.hbm_to_vmem [thread:$0]  %s165, 32, %s168, %s156
        $region24: #{tpu_custom_call.1} parent=15 // pred_fallthru
          _
      $region16: #{tpu_custom_call.1} parent=5 // pred_fallthru
        _
      %p171 = scmp.le.s32.totalorder 1, %s17
      %p172 = scmp.lt.s32.totalorder %s17, 3
      %p173 = pnand %p171, %p172
      %p174 = pneg %p173
      // Predicated region
      $region25: #{tpu_custom_call.1} parent=5 // pred_check
        _
      $region26: #{tpu_custom_call.1} parent=5 // pred_check_branch
        %176 = sbr.rel (%p173) target = $region28
      $region27: #{tpu_custom_call.1} parent=5 // pred_region
        %s177 = ssub.s32 %s17, 1
        %s178 = sand.u32 %s44, 1
        %s179 = scalar_lea.sflag [#allocation3], %s178
        %s180 = sand.u32 %s44, 1
        %s181 = smul.addr %s180, 8
        %s182 = scalar_lea.vmem [#allocation2], %s181
        // Predicated region
        $region29: #{tpu_custom_call.1} parent=27 // pred_check
          %p183 = pneg %p57
        $region30: #{tpu_custom_call.1} parent=27 // pred_check_branch
          %185 = sbr.rel (%p183) target = $region32
        $region31: #{tpu_custom_call.1} parent=27 // pred_region
          %186 = dma.done %s179, 128
        $region32: #{tpu_custom_call.1} parent=27 // pred_fallthru
          _
        %s187 = sand.u32 %s72, 1
        %s188 = scalar_lea.sflag [#allocation6], %s187
        %s189 = sand.u32 %s72, 1
        %s190 = smul.addr %s189, 2
        %s191 = scalar_lea.vmem [#allocation5], %s190
        // Predicated region
        $region33: #{tpu_custom_call.1} parent=27 // pred_check
          %p192 = pneg %p85
        $region34: #{tpu_custom_call.1} parent=27 // pred_check_branch
          %194 = sbr.rel (%p192) target = $region36
        $region35: #{tpu_custom_call.1} parent=27 // pred_region
          %195 = dma.done %s188, 32
        $region36: #{tpu_custom_call.1} parent=27 // pred_fallthru
          _
        %s196 = sand.u32 %s44, 1
        %s197 = scalar_lea.sflag [#allocation3], %s196
        %s198 = sand.u32 %s44, 1
        %s199 = smul.addr %s198, 8
        %s200 = scalar_lea.vmem [#allocation2], %s199
        %p201 = pneg %p57
        %p202 = pneg %p54
        %s203 = sand.u32 %s72, 1
        %s204 = scalar_lea.sflag [#allocation6], %s203
        %s205 = sand.u32 %s72, 1
        %s206 = smul.addr %s205, 2
        %s207 = scalar_lea.vmem [#allocation5], %s206
        %p208 = pneg %p85
        %p209 = pneg %p82
        %p210 = pneg %p111
        %p211 = pneg %p108
        %s212 = sand.u32 %s98, 1
        %s213 = scalar_lea.sflag [#allocation4], %s212
        %s214 = sand.u32 %s98, 1
        %s215 = smul.addr %s214, 2
        %s216 = scalar_lea.vmem [#allocation7], %s215
        %p217 = scmp.eq.s32.totalorder %s27, 0
        // Predicated region
        $region37: #{tpu_custom_call.1} parent=27 // pred_check
          %p218 = pneg %p217
        $region38: #{tpu_custom_call.1} parent=27 // pred_check_branch
          %220 = sbr.rel (%p218) target = $region40
        $region39: #{tpu_custom_call.1} parent=27 // pred_region
          %221 = vst [vmem:[%s216] sm:$0x3] 0.0
        $region40: #{tpu_custom_call.1} parent=27 // pred_fallthru
          _
        %v222 = vld [vmem:[%s191] sm:$0x3]
        %v223 = vld [vmem:[%s182] sm:$0x3]
        %s224 = scalar_lea.vmem %s182, 2 [#allocation2]
        %v225 = vld [vmem:[%s224] sm:$0x3]
        %v226 = vmax.f32 %v223, %v225
        %s227 = scalar_lea.vmem %s182, 4 [#allocation2]
        %v228 = vld [vmem:[%s227] sm:$0x3]
        %v229 = vmax.f32 %v226, %v228
        %s230 = scalar_lea.vmem %s182, 6 [#allocation2]
        %v231 = vld [vmem:[%s230] sm:$0x3]
        %v232 = vmax.f32 %v229, %v231
        %v233 = vsub.f32 %v223, %v232
        %v234 = vmul.f32 %v233, 1.442695
        %v235 = vpow.pop %v234
        %v236 = vadd.f32 %v235, 0.0
        %vm237 = vcmp.eq.s32.totalorder %v222, 0
        %v238 = vsel %vm237, %v223, 0.0
        %v239 = vadd.f32 %v238, 0.0
        %v240 = vsub.f32 %v225, %v232
        %v241 = vmul.f32 %v240, 1.442695
        %v242 = vpow.pop %v241
        %v243 = vadd.f32 %v236, %v242
        %vm244 = vcmp.eq.s32.totalorder %v222, 1
        %v245 = vsel %vm244, %v225, 0.0
        %v246 = vadd.f32 %v239, %v245
        %v247 = vsub.f32 %v228, %v232
        %v248 = vmul.f32 %v247, 1.442695
        %v249 = vpow.pop %v248
        %v250 = vadd.f32 %v243, %v249
        %vm251 = vcmp.eq.s32.totalorder %v222, 2
        %v252 = vsel %vm251, %v228, 0.0
        %v253 = vadd.f32 %v246, %v252
        %v254 = vsub.f32 %v231, %v232
        %v255 = vmul.f32 %v254, 1.442695
        %v256 = vpow.pop %v255
        %v257 = vadd.f32 %v250, %v256
        %vm258 = vcmp.eq.s32.totalorder %v222, 3
        %v259 = vsel %vm258, %v231, 0.0
        %v260 = vadd.f32 %v253, %v259
        %v261 = vlog2.pop %v257
        %v262 = vmul.f32 %v261, 0.6931472
        %v263 = vadd.f32 %v232, %v262
        %v264 = vsub.f32 %v263, %v260
        %v265 = vsub.f32 0.0, %v264
        %v266 = vmul.f32 %v265, 1.442695
        %v267 = vpow.pop %v266
        %v268 = vsub.f32 1.0, %v267
        %v269 = vmax.f32 %v268, 0.0
        %v270 = vmul.f32 %v269, %v269
        %v271 = vld [vmem:[%s216] sm:$0x3]
        %v272 = vmul.f32 %v270, %v264
        %v273 = vadd.f32 %v271, %v272
        %274 = vst [vmem:[%s216] sm:$0x3] %v273
        %s275 = sand.u32 %s98, 1
        %s276 = scalar_lea.sflag [#allocation4], %s275
        %s277 = sand.u32 %s98, 1
        %s278 = smul.addr %s277, 2
        %s279 = scalar_lea.vmem [#allocation7], %s278
        // Predicated region
        $region41: #{tpu_custom_call.1} parent=27 // pred_check
          %p280 = pneg %p108
        $region42: #{tpu_custom_call.1} parent=27 // pred_check_branch
          %282 = sbr.rel (%p280) target = $region44
        $region43: #{tpu_custom_call.1} parent=27 // pred_region
          %s284 = ssub.s32 32, 32
          %285 = vsyncadd %s276, %s284
          %s286 = smul.addr %s26, 32
          %s287 = scalar_lea.hbm %s2, %s286
          %s289 = sshll.u32 %s279, 4
          %s290 = int_to_ptr.vmem [resolvable:$true] %s289
          %292 = dma.vmem_to_hbm [thread:$0]  %s290, 32, %s287, %s276
        $region44: #{tpu_custom_call.1} parent=27 // pred_fallthru
          _
      $region28: #{tpu_custom_call.1} parent=5 // pred_fallthru
        _
      %p293 = scmp.le.s32.totalorder 2, %s17
      // Predicated region
      $region45: #{tpu_custom_call.1} parent=5 // pred_check
        %p294 = pneg %p293
      $region46: #{tpu_custom_call.1} parent=5 // pred_check_branch
        %296 = sbr.rel (%p294) target = $region48
      $region47: #{tpu_custom_call.1} parent=5 // pred_region
        %s297 = ssub.s32 %s17, 2
        // Predicated region
        $region49: #{tpu_custom_call.1} parent=47 // pred_check
          %p298 = pneg %p114
        $region50: #{tpu_custom_call.1} parent=47 // pred_check_branch
          %300 = sbr.rel (%p298) target = $region52
        $region51: #{tpu_custom_call.1} parent=47 // pred_region
          %s301 = sand.u32 %s99, 1
          %s302 = scalar_lea.sflag [#allocation4], %s301
          %s303 = sand.u32 %s99, 1
          %s304 = smul.addr %s303, 2
          %s305 = scalar_lea.vmem [#allocation7], %s304
          %306 = dma.done %s302, 32
        $region52: #{tpu_custom_call.1} parent=47 // pred_fallthru
          _
      $region48: #{tpu_custom_call.1} parent=5 // pred_fallthru
        _
    $region6: #{tpu_custom_call.1} parent=1 // loop_footer
      %s21 = sadd.s32 1, %s17
    $region7: #{tpu_custom_call.1} parent=1 // loop_footer_branch
      %16 = sbr.rel target = $region3
    $region8: #{tpu_custom_call.1} parent=1 // loop_exit
      _
    %307 = vsyncpa [#allocation3], 1
    %s308 = scalar_lea.sflag [#allocation3], 1
    %309 = vsyncpa %s308, 1
    %310 = vsyncpa [#allocation6], 1
    %s311 = scalar_lea.sflag [#allocation6], 1
    %312 = vsyncpa %s311, 1
    %313 = vsyncpa [#allocation4], 1
    %s314 = scalar_lea.sflag [#allocation4], 1
    %315 = vsyncpa %s314, 1

</llo_original>
